<compile_context>
chip_gen: v7x
topology: tpu7x:2x2x1
jax: 0.10.0
libtpu: 0.0.40
codegen_flags: <defaults>
</compile_context>

<pallas_src>
import jax
import jax.numpy as jnp
from jax.experimental import pallas as pl
from jax.experimental.pallas import tpu as pltpu

_VMEM_LIMIT = 48 * 1024 * 1024    # below v7x's 64 MiB physical VMEM
_VMEM_BUDGET = 36 * 1024 * 1024   # target double-buffered working set


def _round_up(x, m):
    return (x + m - 1) // m * m


def _multi_tensorcore_chip():
    """v4 / v5p (megacore) and v7x (2 TCs) profit from >=2 parallel blocks."""
    try:
        kind = jax.devices()[0].device_kind.lower()
    except Exception:
        return False
    return ("v4" in kind) or ("v5p" in kind) or ("v7" in kind)


_MULTI_TC = _multi_tensorcore_chip()


# ----------------------------------------------------------------------------
# Pallas kernels
# ----------------------------------------------------------------------------
def _make_matmul_kernel(act):
    """Tiled bf16 matmul (f32 acc) with fused bias + optional activation."""
    def kernel(a_ref, b_ref, bias_ref, o_ref, acc_ref):
        @pl.when(pl.program_id(3) == 0)
        def _():
            acc_ref[...] = jnp.zeros_like(acc_ref)

        acc_ref[...] += jnp.dot(a_ref[...], b_ref[...],
                                preferred_element_type=jnp.float32)

        @pl.when(pl.program_id(3) == pl.num_programs(3) - 1)
        def _():
            y = acc_ref[...] + bias_ref[...]
            if act == "leaky":
                y = jnp.where(y >= 0, y, 0.2 * y)
            elif act == "tanh":
                y = jnp.tanh(y)
            o_ref[...] = y.astype(o_ref.dtype)
    return kernel


def _pick_tiles(M, K, N, out_bytes):
    Mr = _round_up(M, 8)
    # Full-dim blocks for narrow N / K: no padding to 128 lanes, narrow masked
    # stores are far cheaper than 40x padded-write traffic (final layer N=3).
    tn = N if N % 128 else min(512, N)
    tk = K if K % 128 else min(2048, K)
    if _MULTI_TC and Mr <= 64 and N % 256 == 0 and tn > 256:
        tn = 256  # give the 2nd TensorCore an N block on (1,1,K)-grid layers
    # TODO(synk): a split-K path would parallelize the weight-bound bottleneck
    # layers across both v7x TensorCores even when N cannot be split further.
    tm = min(4096, Mr)

    def vmem(tm_):
        return (2 * tm_ * tk * 2 + 2 * tk * tn * 2
                + 2 * tm_ * tn * out_bytes + 4 * tm_ * tn)

    while tm > 8 and vmem(tm) > _VMEM_BUDGET:
        tm //= 2
    return tm, tk, tn


def matmul_bias(a, w, b, phases=1, act=None, out_dtype=jnp.bfloat16):
    """a:(M, phases*K) @ w:(phases*K, N) + b:(N,) -> (phases, M, N).

    Phase p uses columns [p*K, (p+1)*K) of `a` and the matching rows of `w`
    (phase-major layout), so every sub-pixel phase of a ConvTranspose runs in
    a single pallas_call with a leading parallel grid axis.
    """
    M, PK = a.shape
    PK2, N = w.shape
    assert PK == PK2 and PK % phases == 0
    K = PK // phases
    if phases > 1:
        assert K % 128 == 0, "phase-stacked path needs K % 128 == 0"

    a = a.astype(jnp.bfloat16)
    w = w.astype(jnp.bfloat16)
    bias = b.astype(jnp.float32)

    out_bytes = jnp.dtype(out_dtype).itemsize
    tm, tk, tn = _pick_tiles(M, K, N, out_bytes)
    if K % tk:
        tk = K                      # full-K block (always legal: == full dim)
    Mp = _round_up(M, tm)
    Np = _round_up(N, tn)
    kblocks = K // tk

    # Pads are no-ops for every layer of this network except M < 8 rows.
    if Mp != M:
        a = jnp.pad(a, ((0, Mp - M), (0, 0)))
    if Np != N:
        w = jnp.pad(w, ((0, 0), (0, Np - N)))
        bias = jnp.pad(bias, (0, Np - N))
    bias = bias.reshape(1, Np)

    out = pl.pallas_call(
        _make_matmul_kernel(act),
        out_shape=jax.ShapeDtypeStruct((phases, Mp, Np), out_dtype),
        grid_spec=pltpu.PrefetchScalarGridSpec(
            num_scalar_prefetch=0,
            grid=(phases, Mp // tm, Np // tn, kblocks),
            in_specs=[
                pl.BlockSpec((tm, tk),
                             lambda p, i, j, k: (i, p * kblocks + k)),
                pl.BlockSpec((tk, tn),
                             lambda p, i, j, k: (p * kblocks + k, j)),
                pl.BlockSpec((1, tn), lambda p, i, j, k: (0, j)),
            ],
            out_specs=pl.BlockSpec((None, tm, tn),
                                   lambda p, i, j, k: (p, i, j)),
            scratch_shapes=[pltpu.VMEM((tm, tn), jnp.float32)],
        ),
        compiler_params=pltpu.CompilerParams(
            dimension_semantics=("parallel", "parallel", "parallel",
                                 "arbitrary"),
            vmem_limit_bytes=_VMEM_LIMIT,
        ),
    )(a, w, bias)
    if (Mp, Np) != (M, N):
        out = out[:, :M, :N]
    return out


def _make_bn_kernel(act):
    """Training-mode BatchNorm (batch stats, biased var, eps=1e-5) + act."""
    def kernel(x_ref, gamma_ref, beta_ref, o_ref):
        x = x_ref[...].astype(jnp.float32)
        mean = jnp.mean(x, axis=0, keepdims=True)
        var = jnp.mean(jnp.square(x - mean), axis=0, keepdims=True)
        y = (x - mean) * jax.lax.rsqrt(var + 1e-5)
        y = y * gamma_ref[...] + beta_ref[...]
        if act == "leaky":
            y = jnp.where(y >= 0, y, 0.2 * y)
        o_ref[...] = y.astype(o_ref.dtype)
    return kernel


def batchnorm_act(x, gamma, beta, act=None, out_dtype=jnp.bfloat16):
    """x: (M, C) with M = N*H*W rows; tiled over 128-lane channel blocks."""
    M, C = x.shape
    tc = C if C % 128 else 128
    assert C % tc == 0
    g = gamma.reshape(1, C).astype(jnp.float32)
    bt = beta.reshape(1, C).astype(jnp.float32)
    return pl.pallas_call(
        _make_bn_kernel(act),
        out_shape=jax.ShapeDtypeStruct((M, C), out_dtype),
        grid=(C // tc,),
        in_specs=[
            pl.BlockSpec((M, tc), lambda j: (0, j)),
            pl.BlockSpec((1, tc), lambda j: (0, j)),
            pl.BlockSpec((1, tc), lambda j: (0, j)),
        ],
        out_specs=pl.BlockSpec((M, tc), lambda j: (0, j)),
        compiler_params=pltpu.CompilerParams(
            dimension_semantics=("parallel",),
            vmem_limit_bytes=_VMEM_LIMIT,
        ),
    )(x.astype(jnp.bfloat16), g, bt)


# ----------------------------------------------------------------------------
# Conv / ConvTranspose wrappers (im2col / interleave glue in plain JAX)
# ----------------------------------------------------------------------------
def _im2col(xps, kh, kw, stride, oh, ow):
    """Multi-source im2col; column order (tap_i, tap_j, source, channel)."""
    cols = []
    for i in range(kh):
        for j in range(kw):
            for xp in xps:
                cols.append(xp[:, i:i + stride * (oh - 1) + 1:stride,
                                j:j + stride * (ow - 1) + 1:stride, :])
    p = jnp.concatenate(cols, axis=-1)
    return p.reshape(xps[0].shape[0] * oh * ow, -1)


def conv2d(x, w, b, stride=2, pad=1, act=None, out_dtype=jnp.bfloat16):
    """x: NHWC;  w: torch layout (C_out, C_in, kh, kw)."""
    n, h, wd, _ = x.shape
    co, ci, kh, kw = w.shape
    oh = (h + 2 * pad - kh) // stride + 1
    ow = (wd + 2 * pad - kw) // stride + 1
    xp = jnp.pad(x, ((0, 0), (pad, pad), (pad, pad), (0, 0)))
    # TODO(synk): the im2col patch matrix (4x input bytes) is still
    # materialized in HBM; an in-kernel tap-gather BlockSpec would remove it.
    patches = _im2col([xp], kh, kw, stride, oh, ow)
    wm = jnp.transpose(w, (2, 3, 1, 0)).reshape(kh * kw * ci, co)
    y = matmul_bias(patches, wm, b, phases=1, act=act, out_dtype=out_dtype)
    return y.reshape(n, oh, ow, co)


def conv_transpose2d(xs, w, b, act=None, out_dtype=jnp.bfloat16):
    """ConvTranspose2d(kernel=4, stride=2, padding=1) via 4-phase sub-pixel
    decomposition; all 4 phases run in ONE pallas_call.

    xs: list of NHWC tensors (implicit channel concat -- the torch skip
    concat is never materialized).  w: torch layout (C_in, C_out, 4, 4) with
    C_in matching the concatenated channel count of xs.

    out[2q+a, 2p+c] only sees kernel taps with ky%2 == (1-a), kx%2 == (1-c),
    so each phase is a stride-1 2x2 conv with K = 4*C_in (no dilation zeros).
    """
    n, h, wd = xs[0].shape[:3]
    ci = sum(t.shape[-1] for t in xs)
    ci_w, co, kh, kw = w.shape
    assert (kh, kw) == (4, 4) and ci_w == ci
    assert (4 * ci) % 128 == 0
    xps = [jnp.pad(t, ((0, 0), (1, 1), (1, 1), (0, 0))) for t in xs]

    cols, wmats = [], []
    for a in (0, 1):              # output row parity
        for c in (0, 1):          # output col parity
            for di in (0, 1):     # 2x2 stride-1 taps for this phase
                for dj in (0, 1):
                    for xp in xps:
                        cols.append(xp[:, a + di:a + di + h,
                                        c + dj:c + dj + wd, :])
            # tap index di in {0,1} maps to ky = (3,1) for even output rows,
            # (2,0) for odd rows (same for columns).
            wph = w[:, :, (3 - a)::-2, (3 - c)::-2]        # (ci, co, di, dj)
            wmats.append(jnp.transpose(wph, (2, 3, 0, 1)).reshape(4 * ci, co))

    patches = jnp.concatenate(cols, axis=-1).reshape(n * h * wd, 16 * ci)
    wall = jnp.concatenate(wmats, axis=0)                  # (16*ci, co)
    y = matmul_bias(patches, wall, b, phases=4, act=act, out_dtype=out_dtype)
    # interleave the 4 phases back into the 2x upsampled map
    y = y.reshape(2, 2, n, h, wd, co)
    y = jnp.transpose(y, (2, 3, 0, 4, 1, 5)).reshape(n, 2 * h, 2 * wd, co)
    return y


# ----------------------------------------------------------------------------
# Generator (pix2pix U-Net): parameters + forward
# ----------------------------------------------------------------------------
ENC_CFG = [  # (in_ch placeholder set later, out_ch, batchnorm)
    (None, 64, False), (64, 128, True), (128, 256, True), (256, 512, True),
    (512, 512, True), (512, 512, True), (512, 512, True), (512, 512, False)]
DEC_CFG = [(512, 512), (1024, 512), (1024, 512), (1024, 512),
           (1024, 256), (512, 128), (256, 64)]


def init_generator_params(key, in_channels, out_channels):
    enc_cfg = [(in_channels if c is None else c, o, bn) for c, o, bn in ENC_CFG]
    keys = jax.random.split(key, len(enc_cfg) + len(DEC_CFG) + 1)
    enc, dec = [], []
    for k, (ci, co, bn) in zip(keys[:8], enc_cfg):
        k1, k2 = jax.random.split(k)
        bound = 1.0 / ((ci * 16) ** 0.5)
        layer = {
            "w": jax.random.uniform(k1, (co, ci, 4, 4), jnp.float32, -bound, bound),
            "b": jax.random.uniform(k2, (co,), jnp.float32, -bound, bound),
        }
        if bn:
            layer["gamma"] = jnp.ones((co,), jnp.float32)
            layer["beta"] = jnp.zeros((co,), jnp.float32)
        enc.append(layer)
    for k, (ci, co) in zip(keys[8:15], DEC_CFG):
        k1, k2 = jax.random.split(k)
        bound = 1.0 / ((ci * 16) ** 0.5)
        dec.append({
            "w": jax.random.uniform(k1, (ci, co, 4, 4), jnp.float32, -bound, bound),
            "b": jax.random.uniform(k2, (co,), jnp.float32, -bound, bound),
            "gamma": jnp.ones((co,), jnp.float32),
            "beta": jnp.zeros((co,), jnp.float32),
        })
    kf1, kf2 = jax.random.split(keys[15])
    bound = 1.0 / ((64 * 16) ** 0.5)
    final = {
        "w": jax.random.uniform(kf1, (64, out_channels, 4, 4), jnp.float32,
                                -bound, bound),
        "b": jax.random.uniform(kf2, (out_channels,), jnp.float32, -bound, bound),
    }
    return {"enc": enc, "dec": dec, "final": final}


def generator_forward(params, x_nchw):
    x = jnp.transpose(x_nchw, (0, 2, 3, 1)).astype(jnp.bfloat16)  # -> NHWC bf16
    skips = []
    # encoders: conv -> (bn) -> LeakyReLU(0.2)
    for layer, (_, _, bn) in zip(params["enc"], ENC_CFG):
        if bn:
            y = conv2d(x, layer["w"], layer["b"], act=None)
            n, oh, ow, c = y.shape
            y = batchnorm_act(y.reshape(n * oh * ow, c),
                              layer["gamma"], layer["beta"], act="leaky")
            x = y.reshape(n, oh, ow, c)
        else:
            x = conv2d(x, layer["w"], layer["b"], act="leaky")
        skips.append(x)

    skips = list(reversed(skips[:-1]))
    # decoders: deconv -> bn -> (dropout); torch UpSampleConv.forward never
    # applies its ReLU, so no activation here.  The skip concat is passed as
    # a second deconv source instead of being materialized.
    srcs = [x]
    for i, layer in enumerate(params["dec"]):
        y = conv_transpose2d(srcs, layer["w"], layer["b"], act=None)
        n, oh, ow, c = y.shape
        y = batchnorm_act(y.reshape(n * oh * ow, c),
                          layer["gamma"], layer["beta"], act=None)
        y = y.reshape(n, oh, ow, c)
        # TODO(synk): Dropout2d(0.5) on the first 3 decoders is applied as
        # identity (eval semantics); torch training-mode random channel drop
        # is not reproduced.
        srcs = [y, skips[i]] if i < len(params["dec"]) - 1 else [y]

    y = conv_transpose2d(srcs, params["final"]["w"], params["final"]["b"],
                         act="tanh", out_dtype=jnp.float32)
    return jnp.transpose(y, (0, 3, 1, 2))  # back to NCHW, f32


# ----------------------------------------------------------------------------
# Pure-JAX references (lax convolutions) for numeric validation
# ----------------------------------------------------------------------------
def _ref_conv2d(x, w, b, stride=2, pad=1):
    wm = jnp.transpose(w, (2, 3, 1, 0))                       # HWIO
    y = jax.lax.conv_general_dilated(
        x, wm, (stride, stride), ((pad, pad), (pad, pad)),
        dimension_numbers=("NHWC", "HWIO", "NHWC"))
    return y + b


def _ref_conv_transpose2d(x, w, b, stride=2, pad=1):
    kh, kw = w.shape[2], w.shape[3]
    wm = jnp.transpose(w, (2, 3, 0, 1))[::-1, ::-1]           # flipped HWIO
    y = jax.lax.conv_general_dilated(
        x, wm, (1, 1),
        ((kh - 1 - pad, kh - 1 - pad), (kw - 1 - pad, kw - 1 - pad)),
        lhs_dilation=(stride, stride),
        dimension_numbers=("NHWC", "HWIO", "NHWC"))
    return y + b


def _ref_bn(x, gamma, beta, eps=1e-5):
    mean = jnp.mean(x, axis=(0, 1, 2), keepdims=True)
    var = jnp.mean(jnp.square(x - mean), axis=(0, 1, 2), keepdims=True)
    return (x - mean) * jax.lax.rsqrt(var + eps) * gamma + beta


def _ref_generator(params, x_nchw):
    x = jnp.transpose(x_nchw, (0, 2, 3, 1))
    skips = []
    for layer, (_, _, bn) in zip(params["enc"], ENC_CFG):
        y = _ref_conv2d(x, layer["w"], layer["b"])
        if bn:
            y = _ref_bn(y, layer["gamma"], layer["beta"])
        x = jnp.where(y >= 0, y, 0.2 * y)
        skips.append(x)
    skips = list(reversed(skips[:-1]))
    for i, layer in enumerate(params["dec"]):
        y = _ref_conv_transpose2d(x, layer["w"], layer["b"])
        x = _ref_bn(y, layer["gamma"], layer["beta"])
        if i < len(params["dec"]) - 1:
            x = jnp.concatenate([x, skips[i]], axis=-1)
    y = _ref_conv_transpose2d(x, params["final"]["w"], params["final"]["b"])
    return jnp.transpose(jnp.tanh(y), (0, 3, 1, 2))


def _assert_close(got, want, tol=0.05):
    err = float(jnp.max(jnp.abs(got.astype(jnp.float32) - want)))
    scale = float(jnp.max(jnp.abs(want))) + 1e-6
    assert err <= tol * scale, (err, scale)


def _self_check_blocks():
    key = jax.random.PRNGKey(1)
    ks = jax.random.split(key, 9)
    x = jax.random.normal(ks[0], (2, 8, 8, 32), jnp.float32)
    xb = x.astype(jnp.bfloat16)

    # conv2d (+LeakyReLU) vs lax.conv_general_dilated
    w = 0.1 * jax.random.normal(ks[1], (48, 32, 4, 4), jnp.float32)
    b = 0.1 * jax.random.normal(ks[2], (48,), jnp.float32)
    got = conv2d(xb, w, b, act="leaky", out_dtype=jnp.float32)
    want = _ref_conv2d(x, w, b)
    _assert_close(got, jnp.where(want >= 0, want, 0.2 * want))

    # conv_transpose2d (single source) vs lax reference
    wt = 0.1 * jax.random.normal(ks[3], (32, 48, 4, 4), jnp.float32)
    bt = 0.1 * jax.random.normal(ks[4], (48,), jnp.float32)
    got = conv_transpose2d([xb], wt, bt, out_dtype=jnp.float32)
    _assert_close(got, _ref_conv_transpose2d(x, wt, bt))

    # conv_transpose2d with two sources == transpose-conv of the channel concat
    x2 = jax.random.normal(ks[5], (2, 8, 8, 32), jnp.float32)
    wt2 = 0.1 * jax.random.normal(ks[6], (64, 48, 4, 4), jnp.float32)
    got = conv_transpose2d([xb, x2.astype(jnp.bfloat16)], wt2, bt,
                           out_dtype=jnp.float32)
    want = _ref_conv_transpose2d(jnp.concatenate([x, x2], axis=-1), wt2, bt)
    _assert_close(got, want)

    # batchnorm_act vs batch-stats reference
    gamma = 1.0 + 0.3 * jax.random.normal(ks[7], (32,), jnp.float32)
    beta = 0.2 * jax.random.normal(ks[8], (32,), jnp.float32)
    got = batchnorm_act(xb.reshape(-1, 32), gamma, beta, act="leaky",
                        out_dtype=jnp.float32).reshape(x.shape)
    want = _ref_bn(x, gamma, beta)
    _assert_close(got, jnp.where(want >= 0, want, 0.2 * want))


# ----------------------------------------------------------------------------
if __name__ == "__main__":
    _self_check_blocks()

    key = jax.random.PRNGKey(0)
    kx, kp = jax.random.split(key)
    # 8 stride-2 downsamples force spatial >= 256; keep batch / channels small.
    x = jax.random.normal(kx, (1, 3, 256, 256), jnp.float32)
    params = init_generator_params(kp, in_channels=3, out_channels=3)

    fwd = jax.jit(generator_forward)
    out = jax.block_until_ready(fwd(params, x))

    assert out.shape == (1, 3, 256, 256), out.shape
    assert out.dtype == jnp.float32
    assert bool(jnp.all(jnp.isfinite(out)))
    assert bool(jnp.all(jnp.abs(out) <= 1.0 + 1e-6))

    # loose full-network check vs a float32 lax reference (bf16 drift expected)
    ref = jax.block_until_ready(jax.jit(_ref_generator)(params, x))
    diff = jnp.abs(out - ref)
    assert float(jnp.max(diff)) < 0.25, float(jnp.max(diff))
    assert float(jnp.mean(diff)) < 0.06, float(jnp.mean(diff))

    print("KERNEL_OK")
</pallas_src>

<mosaic_0001>
module attributes {stable_mosaic.version = 11 : i64} {
  func.func @kernel(%arg0: i32, %arg1: i32, %arg2: i32, %arg3: i32, %arg4: memref<32x512xbf16, #tpu.memory_space<vmem>>, %arg5: memref<512x48xbf16, #tpu.memory_space<vmem>>, %arg6: memref<1x48xf32, #tpu.memory_space<vmem>>, %arg7: memref<1x32x48xf32, #tpu.memory_space<vmem>>, %arg8: memref<32x48xf32, #tpu.memory_space<vmem>>) attributes {dimension_semantics = [#tpu.dimension_semantics<parallel>, #tpu.dimension_semantics<parallel>, #tpu.dimension_semantics<parallel>, #tpu.dimension_semantics<arbitrary>], iteration_bounds = array<i64: 1, 1, 1, 1>, scalar_prefetch = 0 : i64, scratch_operands = 1 : i64, tpu.core_type = #tpu.core_type<tc>, window_params = [{transform_indices = @transform_0, window_bounds = array<i64: 32, 512>}, {transform_indices = @transform_1, window_bounds = array<i64: 512, 48>}, {transform_indices = @transform_2, window_bounds = array<i64: 1, 48>}, {transform_indices = @transform_3, window_bounds = array<i64: 1, 32, 48>}]} {
    %c0_i32 = arith.constant 0 : i32
    %0 = arith.cmpi eq, %arg3, %c0_i32 : i32
    %1 = arith.extui %0 : i1 to i32
    %c0_i32_0 = arith.constant 0 : i32
    %2 = arith.cmpi ne, %1, %c0_i32_0 : i32
    scf.if %2 {
      %cst_10 = arith.constant 0.000000e+00 : f32
      %12 = vector.broadcast %cst_10 : f32 to vector<32x48xf32>
      %c0_11 = arith.constant 0 : index
      %c0_12 = arith.constant 0 : index
      %13 = vector.load %arg8[%c0_11, %c0_12] : memref<32x48xf32, #tpu.memory_space<vmem>>, vector<32x48xf32>
      tpu.vector_store %arg8[%c0_11, %c0_12], %12 {strides = array<i32>} : memref<32x48xf32, #tpu.memory_space<vmem>>, vector<32x48xf32>,
    } else {
    }
    %c0 = arith.constant 0 : index
    %c0_1 = arith.constant 0 : index
    %3 = vector.load %arg8[%c0, %c0_1] : memref<32x48xf32, #tpu.memory_space<vmem>>, vector<32x48xf32>
    %c0_2 = arith.constant 0 : index
    %c0_3 = arith.constant 0 : index
    %4 = vector.load %arg4[%c0_2, %c0_3] : memref<32x512xbf16, #tpu.memory_space<vmem>>, vector<32x512xbf16>
    %c0_4 = arith.constant 0 : index
    %c0_5 = arith.constant 0 : index
    %5 = vector.load %arg5[%c0_4, %c0_5] : memref<512x48xbf16, #tpu.memory_space<vmem>>, vector<512x48xbf16>
    %cst = arith.constant dense<0.000000e+00> : vector<32x48xf32>
    %6 = tpu.matmul %4, %5, %cst {dimension_numbers = #tpu.dot_dimension_numbers<[1], [0], [0], [1], [0, 0, 1, 1], [], []>} : vector<32x512xbf16>, vector<512x48xbf16>, vector<32x48xf32> -> vector<32x48xf32>
    %7 = arith.addf %3, %6 : vector<32x48xf32>
    %c0_6 = arith.constant 0 : index
    %c0_7 = arith.constant 0 : index
    %8 = vector.load %arg8[%c0_6, %c0_7] : memref<32x48xf32, #tpu.memory_space<vmem>>, vector<32x48xf32>
    tpu.vector_store %arg8[%c0_6, %c0_7], %7 {strides = array<i32>} : memref<32x48xf32, #tpu.memory_space<vmem>>, vector<32x48xf32>,
    %c0_i32_8 = arith.constant 0 : i32
    %9 = arith.cmpi eq, %arg3, %c0_i32_8 : i32
    %10 = arith.extui %9 : i1 to i32
    %c0_i32_9 = arith.constant 0 : i32
    %11 = arith.cmpi ne, %10, %c0_i32_9 : i32
    scf.if %11 {
      %c0_10 = arith.constant 0 : index
      %c0_11 = arith.constant 0 : index
      %12 = vector.load %arg8[%c0_10, %c0_11] : memref<32x48xf32, #tpu.memory_space<vmem>>, vector<32x48xf32>
      %c0_12 = arith.constant 0 : index
      %c0_13 = arith.constant 0 : index
      %13 = vector.load %arg6[%c0_12, %c0_13] : memref<1x48xf32, #tpu.memory_space<vmem>>, vector<1x48xf32>
      %14 = vector.broadcast %13 : vector<1x48xf32> to vector<32x48xf32>
      %15 = arith.addf %12, %14 : vector<32x48xf32>
      %cst_14 = arith.constant 0.000000e+00 : f32
      %16 = vector.broadcast %cst_14 : f32 to vector<32x48xf32>
      %17 = arith.cmpf oge, %15, %16 : vector<32x48xf32>
      %cst_15 = arith.constant 2.000000e-01 : f32
      %18 = vector.broadcast %cst_15 : f32 to vector<32x48xf32>
      %19 = arith.mulf %18, %15 : vector<32x48xf32>
      %20 = arith.select %17, %15, %19 : vector<32x48xi1>, vector<32x48xf32>
      %c0_16 = arith.constant 0 : index
      %c0_17 = arith.constant 0 : index
      %c0_18 = arith.constant 0 : index
      %21 = vector.load %arg7[%c0_16, %c0_17, %c0_18] : memref<1x32x48xf32, #tpu.memory_space<vmem>>, vector<1x32x48xf32>
      %22 = vector.shape_cast %21 : vector<1x32x48xf32> to vector<32x48xf32>
      %23 = vector.shape_cast %20 : vector<32x48xf32> to vector<1x32x48xf32>
      tpu.vector_store %arg7[%c0_16, %c0_17, %c0_18], %23 {strides = array<i32>} : memref<1x32x48xf32, #tpu.memory_space<vmem>>, vector<1x32x48xf32>,
    } else {
    }
    return
  }
  func.func @transform_0(%arg0: i32, %arg1: i32, %arg2: i32, %arg3: i32) -> (i32, i32) {
    %c1_i32 = arith.constant 1 : i32
    %0 = arith.muli %arg0, %c1_i32 : i32
    %1 = arith.addi %0, %arg3 : i32
    %c0_i32 = arith.constant 0 : i32
    return %arg1, %1 : i32, i32
  }
  func.func @transform_1(%arg0: i32, %arg1: i32, %arg2: i32, %arg3: i32) -> (i32, i32) {
    %c1_i32 = arith.constant 1 : i32
    %0 = arith.muli %arg0, %c1_i32 : i32
    %1 = arith.addi %0, %arg3 : i32
    %c0_i32 = arith.constant 0 : i32
    return %1, %arg2 : i32, i32
  }
  func.func @transform_2(%arg0: i32, %arg1: i32, %arg2: i32, %arg3: i32) -> (i32, i32) {
    %c0_i32 = arith.constant 0 : i32
    %c0_i32_0 = arith.constant 0 : i32
    return %c0_i32, %arg2 : i32, i32
  }
  func.func @transform_3(%arg0: i32, %arg1: i32, %arg2: i32, %arg3: i32) -> (i32, i32, i32) {
    %c0_i32 = arith.constant 0 : i32
    return %arg0, %arg1, %arg2 : i32, i32, i32
  }
}

</mosaic_0001>

<llo_original>
// kernel: tpu_custom_call.1
$region0: #{tpu_custom_call.1}
  #allocation0 [shape = 'u32[]', space=smem, size = 0x4, offset = 0x4, fixed_abs, tag = 'smem constant byte address 0x4 - core index']
  #allocation1 [shape = 'u32[144,128]{1,0:T(1,128)}', space=vmem, size = 0x12000, scoped, tag = 'internal scratch']
  #allocation2 [shape = 'f32[32,48]{1,0:T(8,128)}', space=vmem, size = 0x4000, scoped, tag = 'scratch operand']
  %s0 = inlined_call_operand.vmem [shape: bf16[32,512], index: 0, kind: input, shape index: {}]
  %s1 = inlined_call_operand.vmem [shape: bf16[512,48], index: 1, kind: input, shape index: {}]
  %s2 = inlined_call_operand.vmem [shape: f32[1,48], index: 2, kind: input, shape index: {}]
  %s3 = inlined_call_operand.hbm [shape: f32[1,32,48], index: 3, kind: output, shape index: {}]
  %s4 = sld [smem:[#allocation0]]
  $region30: #{tpu_custom_call.1} parent=0
    _
  %s6 = ssub.s32 1, %s4
  %s7 = scalar_select 0, %s6, %s4
  $region1: #{tpu_custom_call.1} parent=0
    #allocation3 [shape = 'u8[16384]{0}', space=vmem, size = 0x4000, scoped, tag = 'output window, operand 0, single buffered']
    #allocation4 [shape = 's32[1]{0}', space=sflag, size = 0x4, scoped, tag = 'scoped memory for tpu_custom_call.1']
    %8 = vsyncpa [#allocation4], 0
    // Predicated region
    $region2: #{tpu_custom_call.1} parent=1 // pred_check
      _
    $region3: #{tpu_custom_call.1} parent=1 // pred_check_branch
      %10 = sbr.rel (0) target = $region5
    $region4: #{tpu_custom_call.1} parent=1 // pred_region
      %s11 = sadd.s32 0, 0
      %s12 = smul.u32 4, %s11
      %p13 = scmp.lt.s32.totalorder %s12, 3
      %s14 = scalar_select %p13, %s12, 3
      %s15 = smul.addr %s14, 4
      %s16 = scalar_lea.vmem %s0, %s15
      %s17 = sadd.s32 0, 0
      %s18 = smul.u32 4, %s17
    $region5: #{tpu_custom_call.1} parent=1 // pred_fallthru
      _
    // Predicated region
    $region6: #{tpu_custom_call.1} parent=1 // pred_check
      _
    $region7: #{tpu_custom_call.1} parent=1 // pred_check_branch
      %20 = sbr.rel (0) target = $region9
    $region8: #{tpu_custom_call.1} parent=1 // pred_region
      %s21 = sadd.s32 0, 0
      %s22 = smul.u32 64, %s21
      %p23 = scmp.lt.s32.totalorder %s22, 63
      %s24 = scalar_select %p23, %s22, 63
      %s25 = smul.addr %s24, 4
      %s26 = scalar_lea.vmem %s1, %s25
      %s27 = sadd.s32 0, 0
      %s28 = smul.u32 64, %s27
    $region9: #{tpu_custom_call.1} parent=1 // pred_fallthru
      _
    // Predicated region
    $region10: #{tpu_custom_call.1} parent=1 // pred_check
      _
    $region11: #{tpu_custom_call.1} parent=1 // pred_check_branch
      %30 = sbr.rel (0) target = $region13
    $region12: #{tpu_custom_call.1} parent=1 // pred_region
      _
    $region13: #{tpu_custom_call.1} parent=1 // pred_fallthru
      _
    %s31 = sadd.s32 0, 0
    %s32 = smul.u32 4, %s31
    %p33 = scmp.lt.s32.totalorder %s32, 3
    %s34 = scalar_select %p33, %s32, 3
    %s35 = smul.addr %s34, 4
    %s36 = scalar_lea.vmem %s0, %s35
    %s37 = sadd.s32 0, 0
    %s38 = smul.u32 64, %s37
    %p39 = scmp.lt.s32.totalorder %s38, 63
    %s40 = scalar_select %p39, %s38, 63
    %s41 = smul.addr %s40, 4
    %s42 = scalar_lea.vmem %s1, %s41
    %s43 = sadd.s32 0, 0
    %s44 = smul.u32 4, %s43
    %p45 = scmp.lt.s32.totalorder %s44, 3
    %s46 = scalar_select %p45, %s44, 3
    %s47 = smul.addr %s46, 4
    %s48 = scalar_lea.vmem %s0, %s47
    %s49 = sadd.s32 0, 0
    %s50 = smul.u32 4, %s49
    %s51 = sadd.s32 0, 0
    %s52 = smul.u32 64, %s51
    %p53 = scmp.lt.s32.totalorder %s52, 63
    %s54 = scalar_select %p53, %s52, 63
    %s55 = smul.addr %s54, 4
    %s56 = scalar_lea.vmem %s1, %s55
    %s57 = sadd.s32 0, 0
    %s58 = smul.u32 64, %s57
    %p60 = scmp.eq.s32.totalorder 0, 0
    // Predicated region
    $region14: #{tpu_custom_call.1} parent=1 // pred_check
      %p61 = pneg %p60
    $region15: #{tpu_custom_call.1} parent=1 // pred_check_branch
      %63 = sbr.rel (%p61) target = $region17
    $region16: #{tpu_custom_call.1} parent=1 // pred_region
      %vm64 = vcmask 392192
      %65 = vst.msk [vmem:[#allocation2] sm:$0xff] %vm64, 0.0
      %66 = vst.msk [vmem:[#allocation2 + $0x8] sm:$0xff] %vm64, 0.0
      %67 = vst.msk [vmem:[#allocation2 + $0x10] sm:$0xff] %vm64, 0.0
      %68 = vst.msk [vmem:[#allocation2 + $0x18] sm:$0xff] %vm64, 0.0
    $region17: #{tpu_custom_call.1} parent=1 // pred_fallthru
      _
    %v69 = vld [vmem:[#allocation2] sm:$0xff]
    %v70 = vld [vmem:[#allocation2 + $0x8] sm:$0xff]
    %v71 = vld [vmem:[#allocation2 + $0x10] sm:$0xff]
    %v72 = vld [vmem:[#allocation2 + $0x18] sm:$0xff]
    %v73 = vld [vmem:[%s48] sm:$0xff]
    %v74 = vld [vmem:[%s48 + $0x8] sm:$0xff]
    %v75 = vld [vmem:[%s48 + $0x10] sm:$0xff]
    %v76 = vld [vmem:[%s48 + $0x18] sm:$0xff]
    %v77 = vld [vmem:[%s48 + $0x20] sm:$0xff]
    %v78 = vld [vmem:[%s48 + $0x28] sm:$0xff]
    %v79 = vld [vmem:[%s48 + $0x30] sm:$0xff]
    %v80 = vld [vmem:[%s48 + $0x38] sm:$0xff]
    %v81 = vld [vmem:[%s56] sm:$0xf]
    %v82 = vld [vmem:[%s56 + $0x4] sm:$0xf]
    %v83 = vld [vmem:[%s56 + $0x8] sm:$0xf]
    %v84 = vld [vmem:[%s56 + $0xc] sm:$0xf]
    %v85 = vld [vmem:[%s56 + $0x10] sm:$0xf]
    %v86 = vld [vmem:[%s56 + $0x14] sm:$0xf]
    %v87 = vld [vmem:[%s56 + $0x18] sm:$0xf]
    %v88 = vld [vmem:[%s56 + $0x1c] sm:$0xf]
    %v89 = vld [vmem:[%s56 + $0x20] sm:$0xf]
    %v90 = vld [vmem:[%s56 + $0x24] sm:$0xf]
    %v91 = vld [vmem:[%s56 + $0x28] sm:$0xf]
    %v92 = vld [vmem:[%s56 + $0x2c] sm:$0xf]
    %v93 = vld [vmem:[%s56 + $0x30] sm:$0xf]
    %v94 = vld [vmem:[%s56 + $0x34] sm:$0xf]
    %v95 = vld [vmem:[%s56 + $0x38] sm:$0xf]
    %v96 = vld [vmem:[%s56 + $0x3c] sm:$0xf]
    %v97 = vld [vmem:[%s56 + $0x40] sm:$0xf]
    %v98 = vld [vmem:[%s56 + $0x44] sm:$0xf]
    %v99 = vld [vmem:[%s56 + $0x48] sm:$0xf]
    %v100 = vld [vmem:[%s56 + $0x4c] sm:$0xf]
    %v101 = vld [vmem:[%s56 + $0x50] sm:$0xf]
    %v102 = vld [vmem:[%s56 + $0x54] sm:$0xf]
    %v103 = vld [vmem:[%s56 + $0x58] sm:$0xf]
    %v104 = vld [vmem:[%s56 + $0x5c] sm:$0xf]
    %v105 = vld [vmem:[%s56 + $0x60] sm:$0xf]
    %v106 = vld [vmem:[%s56 + $0x64] sm:$0xf]
    %v107 = vld [vmem:[%s56 + $0x68] sm:$0xf]
    %v108 = vld [vmem:[%s56 + $0x6c] sm:$0xf]
    %v109 = vld [vmem:[%s56 + $0x70] sm:$0xf]
    %v110 = vld [vmem:[%s56 + $0x74] sm:$0xf]
    %v111 = vld [vmem:[%s56 + $0x78] sm:$0xf]
    %v112 = vld [vmem:[%s56 + $0x7c] sm:$0xf]
    %v113 = vld [vmem:[%s56 + $0x80] sm:$0xf]
    %v114 = vld [vmem:[%s56 + $0x84] sm:$0xf]
    %v115 = vld [vmem:[%s56 + $0x88] sm:$0xf]
    %v116 = vld [vmem:[%s56 + $0x8c] sm:$0xf]
    %v117 = vld [vmem:[%s56 + $0x90] sm:$0xf]
    %v118 = vld [vmem:[%s56 + $0x94] sm:$0xf]
    %v119 = vld [vmem:[%s56 + $0x98] sm:$0xf]
    %v120 = vld [vmem:[%s56 + $0x9c] sm:$0xf]
    %v121 = vld [vmem:[%s56 + $0xa0] sm:$0xf]
    %v122 = vld [vmem:[%s56 + $0xa4] sm:$0xf]
    %v123 = vld [vmem:[%s56 + $0xa8] sm:$0xf]
    %v124 = vld [vmem:[%s56 + $0xac] sm:$0xf]
    %v125 = vld [vmem:[%s56 + $0xb0] sm:$0xf]
    %v126 = vld [vmem:[%s56 + $0xb4] sm:$0xf]
    %v127 = vld [vmem:[%s56 + $0xb8] sm:$0xf]
    %v128 = vld [vmem:[%s56 + $0xbc] sm:$0xf]
    %v129 = vld [vmem:[%s56 + $0xc0] sm:$0xf]
    %v130 = vld [vmem:[%s56 + $0xc4] sm:$0xf]
    %v131 = vld [vmem:[%s56 + $0xc8] sm:$0xf]
    %v132 = vld [vmem:[%s56 + $0xcc] sm:$0xf]
    %v133 = vld [vmem:[%s56 + $0xd0] sm:$0xf]
    %v134 = vld [vmem:[%s56 + $0xd4] sm:$0xf]
    %v135 = vld [vmem:[%s56 + $0xd8] sm:$0xf]
    %v136 = vld [vmem:[%s56 + $0xdc] sm:$0xf]
    %v137 = vld [vmem:[%s56 + $0xe0] sm:$0xf]
    %v138 = vld [vmem:[%s56 + $0xe4] sm:$0xf]
    %v139 = vld [vmem:[%s56 + $0xe8] sm:$0xf]
    %v140 = vld [vmem:[%s56 + $0xec] sm:$0xf]
    %v141 = vld [vmem:[%s56 + $0xf0] sm:$0xf]
    %v142 = vld [vmem:[%s56 + $0xf4] sm:$0xf]
    %v143 = vld [vmem:[%s56 + $0xf8] sm:$0xf]
    %v144 = vld [vmem:[%s56 + $0xfc] sm:$0xf]
    %v153 = vunpack.c.l.b16 %v73
    %v154 = vunpack.c.h.b16 %v73
    %v155 = vunpack.c.l.b16 %v74
    %v156 = vunpack.c.h.b16 %v74
    %v157 = vunpack.c.l.b16 %v75
    %v158 = vunpack.c.h.b16 %v75
    %v159 = vunpack.c.l.b16 %v76
    %v160 = vunpack.c.h.b16 %v76
    %v161 = vunpack.c.l.b16 %v77
    %v162 = vunpack.c.h.b16 %v77
    %v163 = vunpack.c.l.b16 %v78
    %v164 = vunpack.c.h.b16 %v78
    %v165 = vunpack.c.l.b16 %v79
    %v166 = vunpack.c.h.b16 %v79
    %v167 = vunpack.c.l.b16 %v80
    %v168 = vunpack.c.h.b16 %v80
    %v169 = vpack.c.b16 %v157, %v153
    %v170 = vpack.c.b16 %v158, %v154
    %v171 = vpack.c.b16 %v159, %v155
    %v172 = vpack.c.b16 %v160, %v156
    %v173 = vpack.c.b16 %v165, %v161
    %v174 = vpack.c.b16 %v166, %v162
    %v175 = vpack.c.b16 %v167, %v163
    %v176 = vpack.c.b16 %v168, %v164
    %v249 = vunpack.c.l.b16 %v81
    %v250 = vunpack.c.l.b16 %v82
    %v251 = vunpack.c.l.b16 %v83
    %v252 = vunpack.c.l.b16 %v84
    %v253 = vunpack.c.l.b16 %v85
    %v254 = vunpack.c.l.b16 %v86
    %v255 = vunpack.c.l.b16 %v87
    %v256 = vunpack.c.l.b16 %v88
    %v257 = vunpack.c.l.b16 %v89
    %v258 = vunpack.c.l.b16 %v90
    %v259 = vunpack.c.l.b16 %v91
    %v260 = vunpack.c.l.b16 %v92
    %v261 = vunpack.c.l.b16 %v93
    %v262 = vunpack.c.l.b16 %v94
    %v263 = vunpack.c.l.b16 %v95
    %v264 = vunpack.c.l.b16 %v96
    %v265 = vunpack.c.l.b16 %v97
    %v266 = vunpack.c.l.b16 %v98
    %v267 = vunpack.c.l.b16 %v99
    %v268 = vunpack.c.l.b16 %v100
    %v269 = vunpack.c.l.b16 %v101
    %v270 = vunpack.c.l.b16 %v102
    %v271 = vunpack.c.l.b16 %v103
    %v272 = vunpack.c.l.b16 %v104
    %v273 = vunpack.c.l.b16 %v105
    %v274 = vunpack.c.l.b16 %v106
    %v275 = vunpack.c.l.b16 %v107
    %v276 = vunpack.c.l.b16 %v108
    %v277 = vunpack.c.l.b16 %v109
    %v278 = vunpack.c.l.b16 %v110
    %v279 = vunpack.c.l.b16 %v111
    %v280 = vunpack.c.l.b16 %v112
    %v281 = vunpack.c.l.b16 %v113
    %v282 = vunpack.c.l.b16 %v114
    %v283 = vunpack.c.l.b16 %v115
    %v284 = vunpack.c.l.b16 %v116
    %v285 = vunpack.c.l.b16 %v117
    %v286 = vunpack.c.l.b16 %v118
    %v287 = vunpack.c.l.b16 %v119
    %v288 = vunpack.c.l.b16 %v120
    %v289 = vunpack.c.l.b16 %v121
    %v290 = vunpack.c.l.b16 %v122
    %v291 = vunpack.c.l.b16 %v123
    %v292 = vunpack.c.l.b16 %v124
    %v293 = vunpack.c.l.b16 %v125
    %v294 = vunpack.c.l.b16 %v126
    %v295 = vunpack.c.l.b16 %v127
    %v296 = vunpack.c.l.b16 %v128
    %v297 = vunpack.c.l.b16 %v129
    %v298 = vunpack.c.l.b16 %v130
    %v299 = vunpack.c.l.b16 %v131
    %v300 = vunpack.c.l.b16 %v132
    %v301 = vunpack.c.l.b16 %v133
    %v302 = vunpack.c.l.b16 %v134
    %v303 = vunpack.c.l.b16 %v135
    %v304 = vunpack.c.l.b16 %v136
    %v305 = vunpack.c.l.b16 %v137
    %v306 = vunpack.c.l.b16 %v138
    %v307 = vunpack.c.l.b16 %v139
    %v308 = vunpack.c.l.b16 %v140
    %v309 = vunpack.c.l.b16 %v141
    %v310 = vunpack.c.l.b16 %v142
    %v311 = vunpack.c.l.b16 %v143
    %v312 = vunpack.c.l.b16 %v144
    %v313 = vpack.c.b16 %v250, %v249
    %v314 = vpack.c.b16 %v252, %v251
    %v315 = vpack.c.b16 %v254, %v253
    %v316 = vpack.c.b16 %v256, %v255
    %v317 = vpack.c.b16 %v258, %v257
    %v318 = vpack.c.b16 %v260, %v259
    %v319 = vpack.c.b16 %v262, %v261
    %v320 = vpack.c.b16 %v264, %v263
    %v321 = vpack.c.b16 %v266, %v265
    %v322 = vpack.c.b16 %v268, %v267
    %v323 = vpack.c.b16 %v270, %v269
    %v324 = vpack.c.b16 %v272, %v271
    %v325 = vpack.c.b16 %v274, %v273
    %v326 = vpack.c.b16 %v276, %v275
    %v327 = vpack.c.b16 %v278, %v277
    %v328 = vpack.c.b16 %v280, %v279
    %v329 = vpack.c.b16 %v282, %v281
    %v330 = vpack.c.b16 %v284, %v283
    %v331 = vpack.c.b16 %v286, %v285
    %v332 = vpack.c.b16 %v288, %v287
    %v333 = vpack.c.b16 %v290, %v289
    %v334 = vpack.c.b16 %v292, %v291
    %v335 = vpack.c.b16 %v294, %v293
    %v336 = vpack.c.b16 %v296, %v295
    %v337 = vpack.c.b16 %v298, %v297
    %v338 = vpack.c.b16 %v300, %v299
    %v339 = vpack.c.b16 %v302, %v301
    %v340 = vpack.c.b16 %v304, %v303
    %v341 = vpack.c.b16 %v306, %v305
    %v342 = vpack.c.b16 %v308, %v307
    %v343 = vpack.c.b16 %v310, %v309
    %v344 = vpack.c.b16 %v312, %v311
    %377 = vmatprep.subr.bf16.mxu0 0
    %378 = vmatpush1.bf16.msra.mxu0 %v313
    %379 = vmatprep.subr.bf16.mxu0 0
    %380 = vmatpush1.bf16.msra.mxu0 %v314
    %381 = vmatprep.subr.bf16.mxu0 0
    %382 = vmatpush1.bf16.msra.mxu0 %v315
    %383 = vmatprep.subr.bf16.mxu0 0
    %384 = vmatpush1.bf16.msra.mxu0 %v316
    %385 = vmatprep.subr.bf16.mxu0 0
    %386 = vmatpush1.bf16.msra.mxu0 %v317
    %387 = vmatprep.subr.bf16.mxu0 0
    %388 = vmatpush1.bf16.msra.mxu0 %v318
    %389 = vmatprep.subr.bf16.mxu0 0
    %390 = vmatpush1.bf16.msra.mxu0 %v319
    %391 = vmatprep.subr.bf16.mxu0 0
    %392 = vmatpush1.bf16.msra.mxu0 %v320
    %393 = vmatprep.subr.bf16.mxu0 0
    %394 = vmatpush1.bf16.msra.mxu0 %v321
    %395 = vmatprep.subr.bf16.mxu0 0
    %396 = vmatpush1.bf16.msra.mxu0 %v322
    %397 = vmatprep.subr.bf16.mxu0 0
    %398 = vmatpush1.bf16.msra.mxu0 %v323
    %399 = vmatprep.subr.bf16.mxu0 0
    %400 = vmatpush1.bf16.msra.mxu0 %v324
    %401 = vmatprep.subr.bf16.mxu0 0
    %402 = vmatpush1.bf16.msra.mxu0 %v325
    %403 = vmatprep.subr.bf16.mxu0 0
    %404 = vmatpush1.bf16.msra.mxu0 %v326
    %405 = vmatprep.subr.bf16.mxu0 0
    %406 = vmatpush1.bf16.msra.mxu0 %v327
    %407 = vmatprep.subr.bf16.mxu0 0
    %408 = vmatpush1.bf16.msra.mxu0 %v328
    %409 = vmatprep.mubr.bf16.mxu0 %v170
    %410 = vmatmul.mubr.bf16.gmra.mrb[0].mxu0 %v169
    %v411 = vpop.f32.mrb[0].mxu0
    %v412 = vadd.f32 0.0, %v411
    %v413 = vpop.f32.mrb[0].mxu0
    %v414 = vpop.f32.mrb[0].mxu0
    %v415 = vadd.f32 0.0, %v414
    %v416 = vpop.f32.mrb[0].mxu0
    %417 = vmatprep.mubr.bf16.mxu0 %v174
    %418 = vmatmul.mubr.bf16.gmra.mrb[0].mxu0 %v173
    %v419 = vpop.f32.mrb[0].mxu0
    %v420 = vadd.f32 0.0, %v419
    %v421 = vpop.f32.mrb[0].mxu0
    %v422 = vpop.f32.mrb[0].mxu0
    %v423 = vadd.f32 0.0, %v422
    %v424 = vpop.f32.mrb[0].mxu0
    %425 = vdwg.mxu0
    %426 = vmatprep.subr.bf16.mxu0 0
    %427 = vmatpush1.bf16.msra.mxu0 %v329
    %428 = vmatprep.subr.bf16.mxu0 0
    %429 = vmatpush1.bf16.msra.mxu0 %v330
    %430 = vmatprep.subr.bf16.mxu0 0
    %431 = vmatpush1.bf16.msra.mxu0 %v331
    %432 = vmatprep.subr.bf16.mxu0 0
    %433 = vmatpush1.bf16.msra.mxu0 %v332
    %434 = vmatprep.subr.bf16.mxu0 0
    %435 = vmatpush1.bf16.msra.mxu0 %v333
    %436 = vmatprep.subr.bf16.mxu0 0
    %437 = vmatpush1.bf16.msra.mxu0 %v334
    %438 = vmatprep.subr.bf16.mxu0 0
    %439 = vmatpush1.bf16.msra.mxu0 %v335
    %440 = vmatprep.subr.bf16.mxu0 0
    %441 = vmatpush1.bf16.msra.mxu0 %v336
    %442 = vmatprep.subr.bf16.mxu0 0
    %443 = vmatpush1.bf16.msra.mxu0 %v337
    %444 = vmatprep.subr.bf16.mxu0 0
    %445 = vmatpush1.bf16.msra.mxu0 %v338
    %446 = vmatprep.subr.bf16.mxu0 0
    %447 = vmatpush1.bf16.msra.mxu0 %v339
    %448 = vmatprep.subr.bf16.mxu0 0
    %449 = vmatpush1.bf16.msra.mxu0 %v340
    %450 = vmatprep.subr.bf16.mxu0 0
    %451 = vmatpush1.bf16.msra.mxu0 %v341
    %452 = vmatprep.subr.bf16.mxu0 0
    %453 = vmatpush1.bf16.msra.mxu0 %v342
    %454 = vmatprep.subr.bf16.mxu0 0
    %455 = vmatpush1.bf16.msra.mxu0 %v343
    %456 = vmatprep.subr.bf16.mxu0 0
    %457 = vmatpush1.bf16.msra.mxu0 %v344
    %458 = vmatprep.mubr.bf16.mxu0 %v172
    %459 = vmatmul.mubr.bf16.gmra.mrb[0].mxu0 %v171
    %v460 = vpop.f32.mrb[0].mxu0
    %v461 = vadd.f32 %v412, %v460
    %v462 = vpop.f32.mrb[0].mxu0
    %v463 = vpop.f32.mrb[0].mxu0
    %v464 = vadd.f32 %v415, %v463
    %v465 = vpop.f32.mrb[0].mxu0
    %466 = vmatprep.mubr.bf16.mxu0 %v176
    %467 = vmatmul.mubr.bf16.gmra.mrb[0].mxu0 %v175
    %v468 = vpop.f32.mrb[0].mxu0
    %v469 = vadd.f32 %v420, %v468
    %v470 = vpop.f32.mrb[0].mxu0
    %v471 = vpop.f32.mrb[0].mxu0
    %v472 = vadd.f32 %v423, %v471
    %v473 = vpop.f32.mrb[0].mxu0
    %474 = vdwg.mxu0
    %v475 = vadd.f32 %v69, %v461
    %v476 = vadd.f32 %v70, %v464
    %v477 = vadd.f32 %v71, %v469
    %v478 = vadd.f32 %v72, %v472
    %vm479 = vcmask 392192
    %480 = vst.msk [vmem:[#allocation2] sm:$0xff] %vm479, %v475
    %481 = vst.msk [vmem:[#allocation2 + $0x8] sm:$0xff] %vm479, %v476
    %482 = vst.msk [vmem:[#allocation2 + $0x10] sm:$0xff] %vm479, %v477
    %483 = vst.msk [vmem:[#allocation2 + $0x18] sm:$0xff] %vm479, %v478
    // Predicated region
    $region18: #{tpu_custom_call.1} parent=1 // pred_check
      %p484 = pneg %p60
    $region19: #{tpu_custom_call.1} parent=1 // pred_check_branch
      %486 = sbr.rel (%p484) target = $region21
    $region20: #{tpu_custom_call.1} parent=1 // pred_region
      %v487 = vld [vmem:[#allocation2] sm:$0xff]
      %v488 = vld [vmem:[#allocation2 + $0x8] sm:$0xff]
      %v489 = vld [vmem:[#allocation2 + $0x10] sm:$0xff]
      %v490 = vld [vmem:[#allocation2 + $0x18] sm:$0xff]
      %v491 = vld [vmem:[%s2] sm:$0x1]
      %v493 = vlaneseq
      %v494 = vshrl.u32 %v493, 7
      %v495 = vsub.s32 0, %v494
      %v496 = vrot.slane %v491, %v495
      %v498 = vadd.f32 %v487, %v496
      %v499 = vadd.f32 %v488, %v496
      %v500 = vadd.f32 %v489, %v496
      %v501 = vadd.f32 %v490, %v496
      %vm502 = vcmp.ge.f32.partialorder %v498, 0.0
      %vm503 = vcmp.ge.f32.partialorder %v499, 0.0
      %vm504 = vcmp.ge.f32.partialorder %v500, 0.0
      %vm505 = vcmp.ge.f32.partialorder %v501, 0.0
      %v506 = vmul.f32 %v498, 0.2
      %v507 = vmul.f32 %v499, 0.2
      %v508 = vmul.f32 %v500, 0.2
      %v509 = vmul.f32 %v501, 0.2
      %v510 = vsel %vm502, %v498, %v506
      %v511 = vsel %vm503, %v499, %v507
      %v512 = vsel %vm504, %v500, %v508
      %v513 = vsel %vm505, %v501, %v509
      %514 = vst.msk [vmem:[#allocation3] sm:$0xff] %vm479, %v510
      %515 = vst.msk [vmem:[#allocation3 + $0x8] sm:$0xff] %vm479, %v511
      %516 = vst.msk [vmem:[#allocation3 + $0x10] sm:$0xff] %vm479, %v512
      %517 = vst.msk [vmem:[#allocation3 + $0x18] sm:$0xff] %vm479, %v513
    $region21: #{tpu_custom_call.1} parent=1 // pred_fallthru
      _
    // Predicated region
    $region22: #{tpu_custom_call.1} parent=1 // pred_check
      _
    $region23: #{tpu_custom_call.1} parent=1 // pred_check_branch
      %519 = sbr.rel (0) target = $region25
    $region24: #{tpu_custom_call.1} parent=1 // pred_region
      %s521 = ssub.s32 512, 512
      %522 = vsyncadd [#allocation4], %s521
      %s523 = sshll.u32 [#allocation3], 4
      %s524 = int_to_ptr.vmem [resolvable:$true] %s523
      %529 = dma.vmem_to_hbm [thread:$0]  %s524, 512, %s3, [#allocation4], 128, 128, 8
    $region25: #{tpu_custom_call.1} parent=1 // pred_fallthru
      _
    // Predicated region
    $region26: #{tpu_custom_call.1} parent=1 // pred_check
      _
    $region27: #{tpu_custom_call.1} parent=1 // pred_check_branch
      %531 = sbr.rel (0) target = $region29
    $region28: #{tpu_custom_call.1} parent=1 // pred_region
      %532 = dma.done [#allocation4], 512
    $region29: #{tpu_custom_call.1} parent=1 // pred_fallthru
      _
    %533 = vsyncpa [#allocation4], 1

</llo_original>
